<compile_context>
chip_gen: v5e
topology: v5e:2x2
jax: 0.10.0
libtpu: 0.0.40
codegen_flags: <defaults>
</compile_context>

<pallas_src>
import functools

import jax
import jax.numpy as jnp
from jax import lax
from jax.experimental import pallas as pl
from jax.experimental.pallas import tpu as pltpu


def _dwconv_kernel(prev_ref, curr_ref, next_ref, w_ref, b_ref, o_ref, *,
                   TH, W, C, compute_dtype):
    # prev_ref: (8, W*C)   8-row block whose LAST row is the image row just
    #                      above this tile (any valid block at the image top;
    #                      masked to zero there).
    # curr_ref: (TH, W*C)  the TH rows of this tile.
    # next_ref: (8, W*C)   8-row block whose FIRST row is the image row just
    #                      below this tile (masked to zero at the image bottom).
    # w_ref:    (9, W*C)   f32; tap (dh,dw) at row dh*3+dw, per-channel weight
    #                      tiled W times, boundary lanes of dw=0/dw=2 rows = 0.
    # b_ref:    (1, W*C)   f32 bias tiled W times.
    # o_ref:    (TH, W*C)
    f32 = jnp.float32
    cdt = compute_dtype
    WC = W * C
    t = pl.program_id(1)
    n_t = pl.num_programs(1)

    curr = curr_ref[...]
    if curr.dtype != cdt:
        curr = curr.astype(cdt)

    # Halo rows; fused zero padding along H (rows outside the image -> 0).
    top = (t > 0).astype(cdt)
    bot = (t < n_t - 1).astype(cdt)
    prev_row = prev_ref[7:8, :].astype(cdt) * top   # (1, WC), row t*TH-1
    next_row = next_ref[0:1, :].astype(cdt) * bot   # (1, WC), row (t+1)*TH

    # H-neighbour views via sublane rolls (XLU); the wrapped row is replaced by
    # the halo row with a select against the sublane index (no concatenates).
    rows = lax.broadcasted_iota(jnp.int32, (TH, WC), 0)
    up = jnp.where(rows == 0, prev_row, pltpu.roll(curr, 1, axis=0))          # x[h-1]
    down = jnp.where(rows == TH - 1, next_row, pltpu.roll(curr, TH - 1, axis=0))  # x[h+1]

    w = w_ref[...]        # (9, WC) f32, resident (constant index map)
    acc = b_ref[...]      # (1, WC) f32; broadcasts into the first tap's add,
                          # so no separate "+ bias" pass over the tile.

    # 9-tap multiply-add.  W-neighbours come from lane rolls by one pixel
    # (= C lanes); their wraparound columns carry bogus data but multiply
    # weight lanes that were zeroed on the host, so they never reach the
    # output.  (Note: 0 * Inf/NaN would leak NaN -- inputs assumed finite.)
    for dh, vh in enumerate((up, curr, down)):
        left = pltpu.roll(vh, C, axis=1)        # x[.., w-1, c]
        right = pltpu.roll(vh, WC - C, axis=1)  # x[.., w+1, c]
        for dw, v in enumerate((left, vh, right)):
            k = dh * 3 + dw
            wk = w[k:k + 1, :].astype(cdt)      # no-op cast in the f32 path
            acc = acc + v * wk                  # cdt products, f32 accumulate

    o_ref[...] = acc.astype(o_ref.dtype)


def _pick_row_tile(H, WC, B, target_bytes):
    """Largest divisor of H that is a multiple of 8 and whose f32 row block
    stays under target_bytes; prefers >=2 total grid points (v7x megacore)."""
    cands = [d for d in range(8, H + 1, 8) if H % d == 0]
    if not cands:
        return None
    fitting = [d for d in cands if d * WC * 4 <= target_bytes] or [cands[0]]
    th = max(fitting)
    if B * (H // th) < 2:
        smaller = [d for d in fitting if H // d >= 2]
        if smaller:
            th = max(smaller)
    return th


def _reference(x, weight, bias, H, W):
    """Pure-JAX reference matching the PyTorch module exactly (NCHW conv)."""
    B, N, C = x.shape
    x_nchw = jnp.transpose(x, (0, 2, 1)).reshape(B, C, H, W)
    y = lax.conv_general_dilated(
        x_nchw, weight,
        window_strides=(1, 1), padding=((1, 1), (1, 1)),
        feature_group_count=C,
        dimension_numbers=("NCHW", "OIHW", "NCHW"))
    y = y + bias.reshape(1, C, 1, 1)
    return jnp.transpose(y.reshape(B, C, N), (0, 2, 1))


def dwconv(x, weight, bias, H, W, *, row_tile=None, tap_dtype=None,
           target_block_bytes=2 << 20):
    """x: (B, N, C), N == H*W; weight: (C, 1, 3, 3) (PyTorch layout); bias: (C,).

    tap_dtype: dtype of the 9-tap multiplies (accumulation is always f32).
      Default f32 (correct & safe on all generations, required on v5e).  Pass
      jnp.bfloat16 on v6e/v7x with bf16 activations for ~2x VALU throughput.
    target_block_bytes: f32 footprint budget per row tile (sweep ~1-4 MiB;
      keep <=~2 MiB on v7x which has 64 MiB physical VMEM).
    """
    B, N, C = x.shape
    assert N == H * W
    WC = W * C
    f32 = jnp.float32

    if H % 8 != 0 or WC % 128 != 0:
        # TODO(synk): pad H to a multiple of 8 (zero rows) / repack lanes when
        # W*C % 128 != 0 instead of falling back to the XLA conv.
        return _reference(x, weight, bias, H, W)

    if row_tile is not None:
        TH = row_tile
        assert TH % 8 == 0, "row tile must be a multiple of 8 (aligned stores)"
        assert H % TH == 0, "row tile must divide H"
    else:
        TH = _pick_row_tile(H, WC, B, target_block_bytes)
    T = H // TH
    R8 = H // 8        # 8-row blocks per image (halo block units)
    TH8 = TH // 8      # 8-row blocks per tile

    if tap_dtype is None:
        tap_dtype = f32

    # Lane-dense view: (B, H*W, C) -> (B*H, W*C) is a pure reshape.
    x_flat = x.reshape(B * H, WC)

    # Depthwise weight (C,1,3,3) -> (9, W*C): row dh*3+dw holds weight[:,0,dh,dw]
    # tiled W times so lane l = w*C + c sees its channel's tap.  Passed in f32
    # (tiny, resident) so there is no per-step upcast in the kernel.
    w_taps = jnp.transpose(weight[:, 0, :, :], (1, 2, 0)).reshape(9, C)
    w_flat = jnp.tile(w_taps, (1, W)).astype(f32)
    # Fused zero padding along W: kill the lane-roll wraparound columns by
    # zeroing the boundary taps (dw=0 at pixel 0, dw=2 at pixel W-1).
    lane_px = jnp.arange(WC) // C                      # pixel index per lane
    dw_row = jnp.tile(jnp.arange(3), (3,))             # [0,1,2,0,1,2,0,1,2]
    kill = ((dw_row[:, None] == 0) & (lane_px[None, :] == 0)) | \
           ((dw_row[:, None] == 2) & (lane_px[None, :] == W - 1))
    w_flat = jnp.where(kill, 0.0, w_flat)
    b_flat = jnp.tile(bias, W).reshape(1, WC).astype(f32)

    kernel = functools.partial(_dwconv_kernel, TH=TH, W=W, C=C,
                               compute_dtype=tap_dtype)

    # Halo blocks: 8-row-aligned blocks of the adjacent tiles (no (1, WC)
    # sub-(8,128) blocks).  Clamped at the image borders; the kernel masks
    # those rows to zero, so clamping never leaks data.
    def prev_map(b, t):   # block whose last row is image row t*TH - 1
        return (b * R8 + jnp.maximum(t * TH8 - 1, 0), 0)

    def curr_map(b, t):
        return (b * T + t, 0)

    def next_map(b, t):   # block whose first row is image row (t+1)*TH
        return (b * R8 + jnp.minimum((t + 1) * TH8, R8 - 1), 0)

    bytes_main = 2 * B * H * WC * x.dtype.itemsize
    bytes_halo = 2 * 8 * WC * x.dtype.itemsize * (B * T)
    cost = pl.CostEstimate(
        flops=2 * 9 * B * H * W * C,
        transcendentals=0,
        bytes_accessed=bytes_main + bytes_halo + (w_flat.size + b_flat.size) * 4)

    out_flat = pl.pallas_call(
        kernel,
        out_shape=jax.ShapeDtypeStruct((B * H, WC), x.dtype),
        grid_spec=pltpu.PrefetchScalarGridSpec(
            num_scalar_prefetch=0,
            grid=(B, T),
            in_specs=[
                pl.BlockSpec((8, WC), prev_map),     # halo block above
                pl.BlockSpec((TH, WC), curr_map),    # main row tile
                pl.BlockSpec((8, WC), next_map),     # halo block below
                pl.BlockSpec((9, WC), lambda b, t: (0, 0)),   # weights (resident)
                pl.BlockSpec((1, WC), lambda b, t: (0, 0)),   # bias (resident)
            ],
            out_specs=pl.BlockSpec((TH, WC), curr_map),
        ),
        compiler_params=pltpu.CompilerParams(
            dimension_semantics=("parallel", "parallel"),
            vmem_limit_bytes=32 * 1024 * 1024),
        cost_estimate=cost,
    )(x_flat, x_flat, x_flat, w_flat, b_flat)

    return out_flat.reshape(B, N, C)


if __name__ == "__main__":
    B, C, Hdim, Wdim = 2, 32, 16, 16
    N = Hdim * Wdim

    key = jax.random.PRNGKey(0)
    kx, kw, kb = jax.random.split(key, 3)
    x = jax.random.normal(kx, (B, N, C), dtype=jnp.float32)
    # nn.Conv2d(dim, dim, 3, groups=dim) weight shape: (dim, 1, 3, 3)
    weight = jax.random.normal(kw, (C, 1, 3, 3), dtype=jnp.float32) * 0.1
    bias = jax.random.normal(kb, (C,), dtype=jnp.float32) * 0.1

    ref = _reference(x, weight, bias, Hdim, Wdim)

    # Multi-tile path (row_tile=8 -> 2 row tiles per image): exercises the
    # roll + halo-select handling at both image borders and an interior seam.
    out = jax.block_until_ready(dwconv(x, weight, bias, Hdim, Wdim, row_tile=8))
    assert out.shape == (B, N, C)
    assert jnp.allclose(out, ref, atol=1e-5, rtol=1e-5), "mismatch vs reference (tiled)"

    # Auto-picked tile (single 16-row tile per image at this size).
    out2 = jax.block_until_ready(dwconv(x, weight, bias, Hdim, Wdim))
    assert jnp.allclose(out2, ref, atol=1e-5, rtol=1e-5), "mismatch vs reference (auto tile)"

    # bf16 activations: stay bf16 over the HBM->VMEM DMA, f32 tap math/accum
    # (pass tap_dtype=jnp.bfloat16 on v6e/v7x to also do the taps in bf16).
    xb = x.astype(jnp.bfloat16)
    ref_b = _reference(xb.astype(jnp.float32), weight, bias, Hdim, Wdim)
    out_b = jax.block_until_ready(dwconv(xb, weight, bias, Hdim, Wdim, row_tile=8))
    assert out_b.dtype == jnp.bfloat16
    assert jnp.allclose(out_b.astype(jnp.float32), ref_b, atol=5e-2, rtol=5e-2), \
        "mismatch vs reference (bf16 activations)"

    print("KERNEL_OK")
</pallas_src>

<mosaic_0001>
module attributes {stable_mosaic.version = 11 : i64} {
  func.func @_dwconv_kernel(%arg0: i32, %arg1: i32, %arg2: memref<8x512xf32, #tpu.memory_space<vmem>>, %arg3: memref<8x512xf32, #tpu.memory_space<vmem>>, %arg4: memref<8x512xf32, #tpu.memory_space<vmem>>, %arg5: memref<9x512xf32, #tpu.memory_space<vmem>>, %arg6: memref<1x512xf32, #tpu.memory_space<vmem>>, %arg7: memref<8x512xf32, #tpu.memory_space<vmem>>) attributes {dimension_semantics = [#tpu.dimension_semantics<parallel>, #tpu.dimension_semantics<parallel>], iteration_bounds = array<i64: 2, 2>, scalar_prefetch = 0 : i64, scratch_operands = 0 : i64, tpu.core_type = #tpu.core_type<tc>, window_params = [{transform_indices = @transform_0, window_bounds = array<i64: 8, 512>}, {transform_indices = @transform_1, window_bounds = array<i64: 8, 512>}, {transform_indices = @transform_2, window_bounds = array<i64: 8, 512>}, {pipeline_mode = #tpu.pipeline_mode<synchronous>, transform_indices = @transform_3, window_bounds = array<i64: 9, 512>}, {pipeline_mode = #tpu.pipeline_mode<synchronous>, transform_indices = @transform_4, window_bounds = array<i64: 1, 512>}, {transform_indices = @transform_5, window_bounds = array<i64: 8, 512>}]} {
    %c0 = arith.constant 0 : index
    %c0_0 = arith.constant 0 : index
    %0 = vector.load %arg3[%c0, %c0_0] : memref<8x512xf32, #tpu.memory_space<vmem>>, vector<8x512xf32>
    %c0_i32 = arith.constant 0 : i32
    %1 = arith.cmpi sgt, %arg1, %c0_i32 : i32
    %2 = arith.extui %1 : i1 to i32
    %3 = arith.sitofp %2 : i32 to f32
    %c1_i32 = arith.constant 1 : i32
    %4 = arith.cmpi slt, %arg1, %c1_i32 : i32
    %5 = arith.extui %4 : i1 to i32
    %6 = arith.sitofp %5 : i32 to f32
    %c7 = arith.constant 7 : index
    %c0_1 = arith.constant 0 : index
    %7 = vector.load %arg2[%c7, %c0_1] : memref<8x512xf32, #tpu.memory_space<vmem>>, vector<1x512xf32>
    %8 = vector.broadcast %3 : f32 to vector<1x512xf32>
    %9 = arith.mulf %7, %8 : vector<1x512xf32>
    %c0_2 = arith.constant 0 : index
    %c0_3 = arith.constant 0 : index
    %10 = vector.load %arg4[%c0_2, %c0_3] : memref<8x512xf32, #tpu.memory_space<vmem>>, vector<1x512xf32>
    %11 = vector.broadcast %6 : f32 to vector<1x512xf32>
    %12 = arith.mulf %10, %11 : vector<1x512xf32>
    %13 = tpu.iota {dimensions = array<i32: 0>} : vector<8x512xi32>
    %c0_i32_4 = arith.constant 0 : i32
    %14 = vector.broadcast %c0_i32_4 : i32 to vector<8x512xi32>
    %15 = arith.cmpi eq, %13, %14 : vector<8x512xi32>
    %c1_i32_5 = arith.constant 1 : i32
    %16 = tpu.dynamic_rotate %0 by %c1_i32_5 dim 0 : vector<8x512xf32>, i32 -> vector<8x512xf32>
    %17 = vector.shape_cast %9 : vector<1x512xf32> to vector<1x512xf32>
    %18 = vector.broadcast %17 : vector<1x512xf32> to vector<8x512xf32>
    %19 = arith.select %15, %18, %16 : vector<8x512xi1>, vector<8x512xf32>
    %c7_i32 = arith.constant 7 : i32
    %20 = vector.broadcast %c7_i32 : i32 to vector<8x512xi32>
    %21 = arith.cmpi eq, %13, %20 : vector<8x512xi32>
    %c7_i32_6 = arith.constant 7 : i32
    %22 = tpu.dynamic_rotate %0 by %c7_i32_6 dim 0 : vector<8x512xf32>, i32 -> vector<8x512xf32>
    %23 = vector.shape_cast %12 : vector<1x512xf32> to vector<1x512xf32>
    %24 = vector.broadcast %23 : vector<1x512xf32> to vector<8x512xf32>
    %25 = arith.select %21, %24, %22 : vector<8x512xi1>, vector<8x512xf32>
    %c0_7 = arith.constant 0 : index
    %c0_8 = arith.constant 0 : index
    %26 = vector.load %arg5[%c0_7, %c0_8] : memref<9x512xf32, #tpu.memory_space<vmem>>, vector<9x512xf32>
    %c0_9 = arith.constant 0 : index
    %c0_10 = arith.constant 0 : index
    %27 = vector.load %arg6[%c0_9, %c0_10] : memref<1x512xf32, #tpu.memory_space<vmem>>, vector<1x512xf32>
    %c32_i32 = arith.constant 32 : i32
    %28 = tpu.dynamic_rotate %19 by %c32_i32 dim 1 : vector<8x512xf32>, i32 -> vector<8x512xf32>
    %c480_i32 = arith.constant 480 : i32
    %29 = tpu.dynamic_rotate %19 by %c480_i32 dim 1 : vector<8x512xf32>, i32 -> vector<8x512xf32>
    %30 = vector.extract_strided_slice %26 {offsets = [0, 0], sizes = [1, 512], strides = [1, 1]} : vector<9x512xf32> to vector<1x512xf32>
    %31 = vector.broadcast %30 : vector<1x512xf32> to vector<8x512xf32>
    %32 = arith.mulf %28, %31 : vector<8x512xf32>
    %33 = vector.broadcast %27 : vector<1x512xf32> to vector<8x512xf32>
    %34 = arith.addf %33, %32 : vector<8x512xf32>
    %35 = vector.extract_strided_slice %26 {offsets = [1, 0], sizes = [1, 512], strides = [1, 1]} : vector<9x512xf32> to vector<1x512xf32>
    %36 = vector.broadcast %35 : vector<1x512xf32> to vector<8x512xf32>
    %37 = arith.mulf %19, %36 : vector<8x512xf32>
    %38 = arith.addf %34, %37 : vector<8x512xf32>
    %39 = vector.extract_strided_slice %26 {offsets = [2, 0], sizes = [1, 512], strides = [1, 1]} : vector<9x512xf32> to vector<1x512xf32>
    %40 = vector.broadcast %39 : vector<1x512xf32> to vector<8x512xf32>
    %41 = arith.mulf %29, %40 : vector<8x512xf32>
    %42 = arith.addf %38, %41 : vector<8x512xf32>
    %c32_i32_11 = arith.constant 32 : i32
    %43 = tpu.dynamic_rotate %0 by %c32_i32_11 dim 1 : vector<8x512xf32>, i32 -> vector<8x512xf32>
    %c480_i32_12 = arith.constant 480 : i32
    %44 = tpu.dynamic_rotate %0 by %c480_i32_12 dim 1 : vector<8x512xf32>, i32 -> vector<8x512xf32>
    %45 = vector.extract_strided_slice %26 {offsets = [3, 0], sizes = [1, 512], strides = [1, 1]} : vector<9x512xf32> to vector<1x512xf32>
    %46 = vector.broadcast %45 : vector<1x512xf32> to vector<8x512xf32>
    %47 = arith.mulf %43, %46 : vector<8x512xf32>
    %48 = arith.addf %42, %47 : vector<8x512xf32>
    %49 = vector.extract_strided_slice %26 {offsets = [4, 0], sizes = [1, 512], strides = [1, 1]} : vector<9x512xf32> to vector<1x512xf32>
    %50 = vector.broadcast %49 : vector<1x512xf32> to vector<8x512xf32>
    %51 = arith.mulf %0, %50 : vector<8x512xf32>
    %52 = arith.addf %48, %51 : vector<8x512xf32>
    %53 = vector.extract_strided_slice %26 {offsets = [5, 0], sizes = [1, 512], strides = [1, 1]} : vector<9x512xf32> to vector<1x512xf32>
    %54 = vector.broadcast %53 : vector<1x512xf32> to vector<8x512xf32>
    %55 = arith.mulf %44, %54 : vector<8x512xf32>
    %56 = arith.addf %52, %55 : vector<8x512xf32>
    %c32_i32_13 = arith.constant 32 : i32
    %57 = tpu.dynamic_rotate %25 by %c32_i32_13 dim 1 : vector<8x512xf32>, i32 -> vector<8x512xf32>
    %c480_i32_14 = arith.constant 480 : i32
    %58 = tpu.dynamic_rotate %25 by %c480_i32_14 dim 1 : vector<8x512xf32>, i32 -> vector<8x512xf32>
    %59 = vector.extract_strided_slice %26 {offsets = [6, 0], sizes = [1, 512], strides = [1, 1]} : vector<9x512xf32> to vector<1x512xf32>
    %60 = vector.broadcast %59 : vector<1x512xf32> to vector<8x512xf32>
    %61 = arith.mulf %57, %60 : vector<8x512xf32>
    %62 = arith.addf %56, %61 : vector<8x512xf32>
    %63 = vector.extract_strided_slice %26 {offsets = [7, 0], sizes = [1, 512], strides = [1, 1]} : vector<9x512xf32> to vector<1x512xf32>
    %64 = vector.broadcast %63 : vector<1x512xf32> to vector<8x512xf32>
    %65 = arith.mulf %25, %64 : vector<8x512xf32>
    %66 = arith.addf %62, %65 : vector<8x512xf32>
    %67 = vector.extract_strided_slice %26 {offsets = [8, 0], sizes = [1, 512], strides = [1, 1]} : vector<9x512xf32> to vector<1x512xf32>
    %68 = vector.broadcast %67 : vector<1x512xf32> to vector<8x512xf32>
    %69 = arith.mulf %58, %68 : vector<8x512xf32>
    %70 = arith.addf %66, %69 : vector<8x512xf32>
    %c0_15 = arith.constant 0 : index
    %c0_16 = arith.constant 0 : index
    %71 = vector.load %arg7[%c0_15, %c0_16] : memref<8x512xf32, #tpu.memory_space<vmem>>, vector<8x512xf32>
    tpu.vector_store %arg7[%c0_15, %c0_16], %70 {strides = array<i32>} : memref<8x512xf32, #tpu.memory_space<vmem>>, vector<8x512xf32>,
    return
  }
  func.func @transform_0(%arg0: i32, %arg1: i32) -> (i32, i32) {
    %c2_i32 = arith.constant 2 : i32
    %0 = arith.muli %arg0, %c2_i32 : i32
    %c1_i32 = arith.constant 1 : i32
    %1 = arith.muli %arg1, %c1_i32 : i32
    %c1_i32_0 = arith.constant 1 : i32
    %2 = arith.subi %1, %c1_i32_0 : i32
    %c0_i32 = arith.constant 0 : i32
    %3 = arith.maxsi %2, %c0_i32 : i32
    %4 = arith.addi %0, %3 : i32
    %c0_i32_1 = arith.constant 0 : i32
    %c0_i32_2 = arith.constant 0 : i32
    return %4, %c0_i32_1 : i32, i32
  }
  func.func @transform_1(%arg0: i32, %arg1: i32) -> (i32, i32) {
    %c2_i32 = arith.constant 2 : i32
    %0 = arith.muli %arg0, %c2_i32 : i32
    %1 = arith.addi %0, %arg1 : i32
    %c0_i32 = arith.constant 0 : i32
    %c0_i32_0 = arith.constant 0 : i32
    return %1, %c0_i32 : i32, i32
  }
  func.func @transform_2(%arg0: i32, %arg1: i32) -> (i32, i32) {
    %c2_i32 = arith.constant 2 : i32
    %0 = arith.muli %arg0, %c2_i32 : i32
    %c1_i32 = arith.constant 1 : i32
    %1 = arith.addi %arg1, %c1_i32 : i32
    %c1_i32_0 = arith.constant 1 : i32
    %2 = arith.muli %1, %c1_i32_0 : i32
    %c1_i32_1 = arith.constant 1 : i32
    %3 = arith.minsi %2, %c1_i32_1 : i32
    %4 = arith.addi %0, %3 : i32
    %c0_i32 = arith.constant 0 : i32
    %c0_i32_2 = arith.constant 0 : i32
    return %4, %c0_i32 : i32, i32
  }
  func.func @transform_3(%arg0: i32, %arg1: i32) -> (i32, i32) {
    %c0_i32 = arith.constant 0 : i32
    %c0_i32_0 = arith.constant 0 : i32
    %c0_i32_1 = arith.constant 0 : i32
    return %c0_i32, %c0_i32_0 : i32, i32
  }
  func.func @transform_4(%arg0: i32, %arg1: i32) -> (i32, i32) {
    %c0_i32 = arith.constant 0 : i32
    %c0_i32_0 = arith.constant 0 : i32
    %c0_i32_1 = arith.constant 0 : i32
    return %c0_i32, %c0_i32_0 : i32, i32
  }
  func.func @transform_5(%arg0: i32, %arg1: i32) -> (i32, i32) {
    %c2_i32 = arith.constant 2 : i32
    %0 = arith.muli %arg0, %c2_i32 : i32
    %1 = arith.addi %0, %arg1 : i32
    %c0_i32 = arith.constant 0 : i32
    %c0_i32_0 = arith.constant 0 : i32
    return %1, %c0_i32 : i32, i32
  }
}

</mosaic_0001>

<llo_original>
// kernel: tpu_custom_call.1
$region0: #{tpu_custom_call.1}
  #allocation0 [shape = 'u32[]', space=smem, size = 0x4, offset = 0x4, fixed_abs, tag = 'smem constant byte address 0x4 - core index']
  #allocation1 [shape = 'u32[72,128]{1,0:T(1,128)}', space=vmem, size = 0x9000, scoped, tag = 'internal scratch']
  %s0 = inlined_call_operand.hbm [shape: f32[32,512], index: 0, kind: input, shape index: {}]
  %s1 = inlined_call_operand.hbm [shape: f32[32,512], index: 1, kind: input, shape index: {}]
  %s2 = inlined_call_operand.hbm [shape: f32[32,512], index: 2, kind: input, shape index: {}]
  %s3 = inlined_call_operand.hbm [shape: f32[9,512], index: 3, kind: input, shape index: {}]
  %s4 = inlined_call_operand.hbm [shape: f32[1,512], index: 4, kind: input, shape index: {}]
  %s5 = inlined_call_operand.hbm [shape: f32[32,512], index: 5, kind: output, shape index: {}]
  %s6 = sld [smem:[#allocation0]]
  $region73: #{tpu_custom_call.1} parent=0
    _
  %s8 = ssub.s32 1, %s6
  %s9 = scalar_select 0, %s8, %s6
  $region1: #{tpu_custom_call.1} parent=0
    #allocation2 [shape = 'u8[32768]{0}', space=vmem, size = 0x8000, scoped, tag = 'input window, operand 0']
    #allocation3 [shape = 's32[2]{0}', space=sflag, size = 0x8, scoped, tag = 'scoped memory for tpu_custom_call.1']
    #allocation4 [shape = 's32[2]{0}', space=sflag, size = 0x8, scoped, tag = 'scoped memory for tpu_custom_call.1']
    #allocation5 [shape = 'u8[32768]{0}', space=vmem, size = 0x8000, scoped, tag = 'input window, operand 1']
    #allocation6 [shape = 's32[2]{0}', space=sflag, size = 0x8, scoped, tag = 'scoped memory for tpu_custom_call.1']
    #allocation7 [shape = 'u8[32768]{0}', space=vmem, size = 0x8000, scoped, tag = 'input window, operand 2']
    #allocation8 [shape = 'u8[32768]{0}', space=vmem, size = 0x8000, scoped, tag = 'input window, operand 3, single buffered']
    #allocation9 [shape = 's32[1]{0}', space=sflag, size = 0x4, scoped, tag = 'scoped memory for tpu_custom_call.1']
    #allocation10 [shape = 'u8[2048]{0}', space=vmem, size = 0x800, scoped, tag = 'input window, operand 4, single buffered']
    #allocation11 [shape = 'u8[32768]{0}', space=vmem, size = 0x8000, scoped, tag = 'output window, operand 0']
    %10 = vsyncpa [#allocation3], 0
    %s11 = scalar_lea.sflag [#allocation3], 1
    %12 = vsyncpa %s11, 0
    %13 = vsyncpa [#allocation6], 0
    %s14 = scalar_lea.sflag [#allocation6], 1
    %15 = vsyncpa %s14, 0
    %16 = vsyncpa [#allocation9], 0
    %17 = vsyncpa [#allocation4], 0
    %s18 = scalar_lea.sflag [#allocation4], 1
    %19 = vsyncpa %s18, 0
    loop: start=0, step=1, limit=6
    $region2: #{tpu_custom_call.1} parent=1 // loop_pre_header
      _
    $region3: #{tpu_custom_call.1} parent=1 // loop_header
      %s21 = sphi 0, %s25
      %p22 = scmp.ge.s32.totalorder %s21, 6
      %s28 = sphi 0, %s40
      %s29 = sphi 0, %s36
      %s30 = sphi 0, %s28
      %s31 = sphi 0, %s29
      %s32 = sphi 0, %s30
      %s33 = sphi 0, %s31
      %s53 = sphi 0, %s55
      %s56 = sphi 0, %s53
      %s57 = sphi 0, %s56
      %s73 = sphi 0, %s57
      %s83 = sphi 0, %s85
      %s86 = sphi 0, %s83
      %s87 = sphi 0, %s86
      %s103 = sphi 0, %s87
      %s119 = sphi 0, %s121
      %s122 = sphi 0, %s119
      %s123 = sphi 0, %s122
      %s139 = sphi 0, %s123
      %s143 = sphi 0, %s143
      %s145 = sphi 0, %s143
      %s146 = sphi 0, %s145
      %s160 = sphi 0, %s146
      %s164 = sphi 0, %s164
      %s166 = sphi 0, %s164
      %s167 = sphi 0, %s166
      %s181 = sphi 0, %s167
      %s191 = sphi 0, %s193
      %s194 = sphi 0, %s191
      %s195 = sphi 0, %s194
      %s211 = sphi 0, %s195
    $region4: #{tpu_custom_call.1} parent=1 // loop_header_branch
      %24 = sbr.rel (%p22) target = $region8
    $region5: #{tpu_custom_call.1} parent=1 // loop_body
      %s26 = ssub.s32 %s21, 1
      %s27 = ssub.s32 %s21, 2
      %s34 = sadd.s32 1, %s29
      %p35 = scmp.ge.s32.totalorder %s34, 2
      %s36 = scalar_select %p35, 0, %s34
      %s37 = sadd.s32 1, %s28
      %s38 = scalar_select %p35, %s37, %s28
      %p39 = scmp.ge.s32.totalorder %s38, 2
      %s40 = scalar_select %p39, 0, %s38
      %s41 = smul.u32 %s28, 2
      %s42 = ssub.s32 %s29, 1
      %p43 = scmp.gt.s32.totalorder %s42, 0
      %s44 = scalar_select %p43, %s42, 0
      %s45 = sadd.s32 %s41, %s44
      %s46 = smul.u32 %s40, 2
      %s47 = ssub.s32 %s36, 1
      %p48 = scmp.gt.s32.totalorder %s47, 0
      %s49 = scalar_select %p48, %s47, 0
      %s50 = sadd.s32 %s46, %s49
      %s51 = ssub.s32 %s45, %s50
      %p52 = scmp.eq.s32.totalorder %s51, 0
      %s54 = sadd.s32 %s53, 1
      %s55 = scalar_select %p52, %s53, %s54
      %p58 = pneg %p52
      %p59 = scmp.eq.s32.totalorder %s21, 3
      %p60 = por %p58, %p59
      %p61 = scmp.ne.s32.totalorder %s53, %s56
      %p62 = scmp.eq.s32.totalorder %s21, 0
      %p63 = por %p61, %p62
      %p64 = scmp.ne.s32.totalorder %s53, %s56
      %p65 = scmp.eq.s32.totalorder %s26, 3
      %p66 = por %p64, %p65
      %p67 = scmp.ne.s32.totalorder %s56, %s57
      %p68 = scmp.eq.s32.totalorder %s26, 0
      %p69 = por %p67, %p68
      %p70 = scmp.ne.s32.totalorder %s56, %s57
      %p71 = scmp.eq.s32.totalorder %s27, 3
      %p72 = por %p70, %p71
      %p74 = scmp.ne.s32.totalorder %s57, %s73
      %p75 = scmp.eq.s32.totalorder %s27, 0
      %p76 = por %p74, %p75
      %s77 = smul.u32 %s28, 2
      %s78 = sadd.s32 %s77, %s29
      %s79 = smul.u32 %s40, 2
      %s80 = sadd.s32 %s79, %s36
      %s81 = ssub.s32 %s78, %s80
      %p82 = scmp.eq.s32.totalorder %s81, 0
      %s84 = sadd.s32 %s83, 1
      %s85 = scalar_select %p82, %s83, %s84
      %p88 = pneg %p82
      %p89 = scmp.eq.s32.totalorder %s21, 3
      %p90 = por %p88, %p89
      %p91 = scmp.ne.s32.totalorder %s83, %s86
      %p92 = scmp.eq.s32.totalorder %s21, 0
      %p93 = por %p91, %p92
      %p94 = scmp.ne.s32.totalorder %s83, %s86
      %p95 = scmp.eq.s32.totalorder %s26, 3
      %p96 = por %p94, %p95
      %p97 = scmp.ne.s32.totalorder %s86, %s87
      %p98 = scmp.eq.s32.totalorder %s26, 0
      %p99 = por %p97, %p98
      %p100 = scmp.ne.s32.totalorder %s86, %s87
      %p101 = scmp.eq.s32.totalorder %s27, 3
      %p102 = por %p100, %p101
      %p104 = scmp.ne.s32.totalorder %s87, %s103
      %p105 = scmp.eq.s32.totalorder %s27, 0
      %p106 = por %p104, %p105
      %s107 = smul.u32 %s28, 2
      %s108 = sadd.s32 %s29, 1
      %p109 = scmp.lt.s32.totalorder %s108, 1
      %s110 = scalar_select %p109, %s108, 1
      %s111 = sadd.s32 %s107, %s110
      %s112 = smul.u32 %s40, 2
      %s113 = sadd.s32 %s36, 1
      %p114 = scmp.lt.s32.totalorder %s113, 1
      %s115 = scalar_select %p114, %s113, 1
      %s116 = sadd.s32 %s112, %s115
      %s117 = ssub.s32 %s111, %s116
      %p118 = scmp.eq.s32.totalorder %s117, 0
      %s120 = sadd.s32 %s119, 1
      %s121 = scalar_select %p118, %s119, %s120
      %p124 = pneg %p118
      %p125 = scmp.eq.s32.totalorder %s21, 3
      %p126 = por %p124, %p125
      %p127 = scmp.ne.s32.totalorder %s119, %s122
      %p128 = scmp.eq.s32.totalorder %s21, 0
      %p129 = por %p127, %p128
      %p130 = scmp.ne.s32.totalorder %s119, %s122
      %p131 = scmp.eq.s32.totalorder %s26, 3
      %p132 = por %p130, %p131
      %p133 = scmp.ne.s32.totalorder %s122, %s123
      %p134 = scmp.eq.s32.totalorder %s26, 0
      %p135 = por %p133, %p134
      %p136 = scmp.ne.s32.totalorder %s122, %s123
      %p137 = scmp.eq.s32.totalorder %s27, 3
      %p138 = por %p136, %p137
      %p140 = scmp.ne.s32.totalorder %s123, %s139
      %p141 = scmp.eq.s32.totalorder %s27, 0
      %p142 = por %p140, %p141
      %s144 = sadd.s32 %s143, 1
      %p147 = scmp.eq.s32.totalorder %s21, 3
      %p148 = scmp.ne.s32.totalorder %s143, %s145
      %p149 = scmp.eq.s32.totalorder %s21, 0
      %p150 = por %p148, %p149
      %p151 = scmp.ne.s32.totalorder %s143, %s145
      %p152 = scmp.eq.s32.totalorder %s26, 3
      %p153 = por %p151, %p152
      %p154 = scmp.ne.s32.totalorder %s145, %s146
      %p155 = scmp.eq.s32.totalorder %s26, 0
      %p156 = por %p154, %p155
      %p157 = scmp.ne.s32.totalorder %s145, %s146
      %p158 = scmp.eq.s32.totalorder %s27, 3
      %p159 = por %p157, %p158
      %p161 = scmp.ne.s32.totalorder %s146, %s160
      %p162 = scmp.eq.s32.totalorder %s27, 0
      %p163 = por %p161, %p162
      %s165 = sadd.s32 %s164, 1
      %p168 = scmp.eq.s32.totalorder %s21, 3
      %p169 = scmp.ne.s32.totalorder %s164, %s166
      %p170 = scmp.eq.s32.totalorder %s21, 0
      %p171 = por %p169, %p170
      %p172 = scmp.ne.s32.totalorder %s164, %s166
      %p173 = scmp.eq.s32.totalorder %s26, 3
      %p174 = por %p172, %p173
      %p175 = scmp.ne.s32.totalorder %s166, %s167
      %p176 = scmp.eq.s32.totalorder %s26, 0
      %p177 = por %p175, %p176
      %p178 = scmp.ne.s32.totalorder %s166, %s167
      %p179 = scmp.eq.s32.totalorder %s27, 3
      %p180 = por %p178, %p179
      %p182 = scmp.ne.s32.totalorder %s167, %s181
      %p183 = scmp.eq.s32.totalorder %s27, 0
      %p184 = por %p182, %p183
      %s185 = smul.u32 %s28, 2
      %s186 = sadd.s32 %s185, %s29
      %s187 = smul.u32 %s40, 2
      %s188 = sadd.s32 %s187, %s36
      %s189 = ssub.s32 %s186, %s188
      %p190 = scmp.eq.s32.totalorder %s189, 0
      %s192 = sadd.s32 %s191, 1
      %s193 = scalar_select %p190, %s191, %s192
      %p196 = pneg %p190
      %p197 = scmp.eq.s32.totalorder %s21, 3
      %p198 = por %p196, %p197
      %p199 = scmp.ne.s32.totalorder %s191, %s194
      %p200 = scmp.eq.s32.totalorder %s21, 0
      %p201 = por %p199, %p200
      %p202 = scmp.ne.s32.totalorder %s191, %s194
      %p203 = scmp.eq.s32.totalorder %s26, 3
      %p204 = por %p202, %p203
      %p205 = scmp.ne.s32.totalorder %s194, %s195
      %p206 = scmp.eq.s32.totalorder %s26, 0
      %p207 = por %p205, %p206
      %p208 = scmp.ne.s32.totalorder %s194, %s195
      %p209 = scmp.eq.s32.totalorder %s27, 3
      %p210 = por %p208, %p209
      %p212 = scmp.ne.s32.totalorder %s195, %s211
      %p213 = scmp.eq.s32.totalorder %s27, 0
      %p214 = por %p212, %p213
      %p215 = scmp.le.s32.totalorder 1, %s21
      %p216 = scmp.lt.s32.totalorder %s21, 5
      %p217 = pnand %p215, %p216
      %p218 = pneg %p217
      // Predicated region
      $region9: #{tpu_custom_call.1} parent=5 // pred_check
        _
      $region10: #{tpu_custom_call.1} parent=5 // pred_check_branch
        %220 = sbr.rel (%p217) target = $region12
      $region11: #{tpu_custom_call.1} parent=5 // pred_region
        %s221 = ssub.s32 %s21, 1
        // Predicated region
        $region13: #{tpu_custom_call.1} parent=11 // pred_check
          %p222 = pneg %p156
        $region14: #{tpu_custom_call.1} parent=11 // pred_check_branch
          %224 = sbr.rel (%p222) target = $region16
        $region15: #{tpu_custom_call.1} parent=11 // pred_region
          %226 = vsyncadd [#allocation9], 0
          %s227 = sshll.u32 %s3, 4
          %s228 = int_to_ptr.hbm [resolvable:$true] %s227
          %s229 = sshll.u32 [#allocation8], 4
          %s230 = int_to_ptr.vmem [resolvable:$true] %s229
          %235 = dma.hbm_to_vmem [thread:$0]  %s228, 1024, %s230, [#allocation9], 512, 512, 32
        $region16: #{tpu_custom_call.1} parent=11 // pred_fallthru
          _
        // Predicated region
        $region17: #{tpu_custom_call.1} parent=11 // pred_check
          %p236 = pneg %p177
        $region18: #{tpu_custom_call.1} parent=11 // pred_check_branch
          %238 = sbr.rel (%p236) target = $region20
        $region19: #{tpu_custom_call.1} parent=11 // pred_region
          %240 = vsyncadd [#allocation9], 0
          %s242 = sshll.u32 %s4, 4
          %s243 = int_to_ptr.hbm [resolvable:$true] %s242
          %s244 = sshll.u32 [#allocation10], 4
          %s245 = int_to_ptr.vmem [resolvable:$true] %s244
          %247 = dma.hbm_to_vmem [thread:$0]  %s243, 64, %s245, [#allocation9]
        $region20: #{tpu_custom_call.1} parent=11 // pred_fallthru
          _
      $region12: #{tpu_custom_call.1} parent=5 // pred_fallthru
        _
      %p248 = scmp.lt.s32.totalorder %s21, 4
      // Predicated region
      $region21: #{tpu_custom_call.1} parent=5 // pred_check
        %p249 = pneg %p248
      $region22: #{tpu_custom_call.1} parent=5 // pred_check_branch
        %251 = sbr.rel (%p249) target = $region24
      $region23: #{tpu_custom_call.1} parent=5 // pred_region
        // Predicated region
        $region25: #{tpu_custom_call.1} parent=23 // pred_check
          %p252 = pneg %p63
        $region26: #{tpu_custom_call.1} parent=23 // pred_check_branch
          %254 = sbr.rel (%p252) target = $region28
        $region27: #{tpu_custom_call.1} parent=23 // pred_region
          %s255 = sand.u32 %s53, 1
          %s256 = scalar_lea.sflag [#allocation3], %s255
          %s257 = sand.u32 %s53, 1
          %s258 = smul.addr %s257, 32
          %s259 = scalar_lea.vmem [#allocation2], %s258
          %s260 = smul.u32 %s28, 2
          %s261 = ssub.s32 %s29, 1
          %p262 = scmp.gt.s32.totalorder %s261, 0
          %s263 = scalar_select %p262, %s261, 0
          %s264 = sadd.s32 %s260, %s263
          %266 = vsyncadd %s256, 0
          %s267 = smul.addr %s264, 4
          %s268 = smul.addr %s267, 8
          %s269 = scalar_lea.hbm %s0, %s268
          %s271 = sshll.u32 %s269, 4
          %s272 = int_to_ptr.hbm [resolvable:$true] %s271
          %s273 = sshll.u32 %s259, 4
          %s274 = int_to_ptr.vmem [resolvable:$true] %s273
          %276 = dma.hbm_to_vmem [thread:$0]  %s272, 512, %s274, %s256
        $region28: #{tpu_custom_call.1} parent=23 // pred_fallthru
          _
        // Predicated region
        $region29: #{tpu_custom_call.1} parent=23 // pred_check
          %p277 = pneg %p93
        $region30: #{tpu_custom_call.1} parent=23 // pred_check_branch
          %279 = sbr.rel (%p277) target = $region32
        $region31: #{tpu_custom_call.1} parent=23 // pred_region
          %s280 = sand.u32 %s21, 1
          %s281 = scalar_lea.sflag [#allocation6], %s280
          %s282 = sand.u32 %s83, 1
          %s283 = smul.addr %s282, 32
          %s284 = scalar_lea.vmem [#allocation5], %s283
          %s285 = smul.u32 %s28, 2
          %s286 = sadd.s32 %s285, %s29
          %288 = vsyncadd %s281, 0
          %s289 = smul.addr %s286, 4
          %s290 = smul.addr %s289, 8
          %s291 = scalar_lea.hbm %s1, %s290
          %s293 = sshll.u32 %s291, 4
          %s294 = int_to_ptr.hbm [resolvable:$true] %s293
          %s295 = sshll.u32 %s284, 4
          %s296 = int_to_ptr.vmem [resolvable:$true] %s295
          %298 = dma.hbm_to_vmem [thread:$0]  %s294, 512, %s296, %s281
        $region32: #{tpu_custom_call.1} parent=23 // pred_fallthru
          _
        // Predicated region
        $region33: #{tpu_custom_call.1} parent=23 // pred_check
          %p299 = pneg %p129
        $region34: #{tpu_custom_call.1} parent=23 // pred_check_branch
          %301 = sbr.rel (%p299) target = $region36
        $region35: #{tpu_custom_call.1} parent=23 // pred_region
          %s302 = sand.u32 %s21, 1
          %s303 = scalar_lea.sflag [#allocation6], %s302
          %s304 = sand.u32 %s119, 1
          %s305 = smul.addr %s304, 32
          %s306 = scalar_lea.vmem [#allocation7], %s305
          %s307 = smul.u32 %s28, 2
          %s308 = sadd.s32 %s29, 1
          %p309 = scmp.lt.s32.totalorder %s308, 1
          %s310 = scalar_select %p309, %s308, 1
          %s311 = sadd.s32 %s307, %s310
          %313 = vsyncadd %s303, 0
          %s314 = smul.addr %s311, 4
          %s315 = smul.addr %s314, 8
          %s316 = scalar_lea.hbm %s2, %s315
          %s318 = sshll.u32 %s316, 4
          %s319 = int_to_ptr.hbm [resolvable:$true] %s318
          %s320 = sshll.u32 %s306, 4
          %s321 = int_to_ptr.vmem [resolvable:$true] %s320
          %323 = dma.hbm_to_vmem [thread:$0]  %s319, 512, %s321, %s303
        $region36: #{tpu_custom_call.1} parent=23 // pred_fallthru
          _
      $region24: #{tpu_custom_call.1} parent=5 // pred_fallthru
        _
      %p324 = scmp.le.s32.totalorder 1, %s21
      %p325 = scmp.lt.s32.totalorder %s21, 5
      %p326 = pnand %p324, %p325
      %p327 = pneg %p326
      // Predicated region
      $region37: #{tpu_custom_call.1} parent=5 // pred_check
        _
      $region38: #{tpu_custom_call.1} parent=5 // pred_check_branch
        %329 = sbr.rel (%p326) target = $region40
      $region39: #{tpu_custom_call.1} parent=5 // pred_region
        %s330 = ssub.s32 %s21, 1
        %s331 = sand.u32 %s56, 1
        %s332 = scalar_lea.sflag [#allocation3], %s331
        %s333 = sand.u32 %s56, 1
        %s334 = smul.addr %s333, 32
        %s335 = scalar_lea.vmem [#allocation2], %s334
        // Predicated region
        $region41: #{tpu_custom_call.1} parent=39 // pred_check
          %p336 = pneg %p69
        $region42: #{tpu_custom_call.1} parent=39 // pred_check_branch
          %338 = sbr.rel (%p336) target = $region44
        $region43: #{tpu_custom_call.1} parent=39 // pred_region
          %340 = dma.done %s332, 512
        $region44: #{tpu_custom_call.1} parent=39 // pred_fallthru
          _
        %s341 = sand.u32 %s26, 1
        %s342 = scalar_lea.sflag [#allocation6], %s341
        %s343 = sand.u32 %s86, 1
        %s344 = smul.addr %s343, 32
        %s345 = scalar_lea.vmem [#allocation5], %s344
        // Predicated region
        $region45: #{tpu_custom_call.1} parent=39 // pred_check
          %p346 = pneg %p99
        $region46: #{tpu_custom_call.1} parent=39 // pred_check_branch
          %348 = sbr.rel (%p346) target = $region48
        $region47: #{tpu_custom_call.1} parent=39 // pred_region
          %350 = dma.done %s342, 512
        $region48: #{tpu_custom_call.1} parent=39 // pred_fallthru
          _
        %s351 = sand.u32 %s26, 1
        %s352 = scalar_lea.sflag [#allocation6], %s351
        %s353 = sand.u32 %s122, 1
        %s354 = smul.addr %s353, 32
        %s355 = scalar_lea.vmem [#allocation7], %s354
        // Predicated region
        $region49: #{tpu_custom_call.1} parent=39 // pred_check
          %p356 = pneg %p135
        $region50: #{tpu_custom_call.1} parent=39 // pred_check_branch
          %358 = sbr.rel (%p356) target = $region52
        $region51: #{tpu_custom_call.1} parent=39 // pred_region
          %360 = dma.done %s352, 512
        $region52: #{tpu_custom_call.1} parent=39 // pred_fallthru
          _
        // Predicated region
        $region53: #{tpu_custom_call.1} parent=39 // pred_check
          %p361 = pneg %p156
        $region54: #{tpu_custom_call.1} parent=39 // pred_check_branch
          %363 = sbr.rel (%p361) target = $region56
        $region55: #{tpu_custom_call.1} parent=39 // pred_region
          %365 = dma.done [#allocation9], 1024
        $region56: #{tpu_custom_call.1} parent=39 // pred_fallthru
          _
        // Predicated region
        $region57: #{tpu_custom_call.1} parent=39 // pred_check
          %p366 = pneg %p177
        $region58: #{tpu_custom_call.1} parent=39 // pred_check_branch
          %368 = sbr.rel (%p366) target = $region60
        $region59: #{tpu_custom_call.1} parent=39 // pred_region
          %370 = dma.done [#allocation9], 64
        $region60: #{tpu_custom_call.1} parent=39 // pred_fallthru
          _
        %s371 = sand.u32 %s56, 1
        %s372 = scalar_lea.sflag [#allocation3], %s371
        %s373 = sand.u32 %s56, 1
        %s374 = smul.addr %s373, 32
        %s375 = scalar_lea.vmem [#allocation2], %s374
        %p376 = pneg %p69
        %p377 = pneg %p66
        %s378 = sand.u32 %s26, 1
        %s379 = scalar_lea.sflag [#allocation6], %s378
        %s380 = sand.u32 %s86, 1
        %s381 = smul.addr %s380, 32
        %s382 = scalar_lea.vmem [#allocation5], %s381
        %p383 = pneg %p99
        %p384 = pneg %p96
        %s385 = sand.u32 %s26, 1
        %s386 = scalar_lea.sflag [#allocation6], %s385
        %s387 = sand.u32 %s122, 1
        %s388 = smul.addr %s387, 32
        %s389 = scalar_lea.vmem [#allocation7], %s388
        %p390 = pneg %p135
        %p391 = pneg %p132
        %p392 = pneg %p156
        %p393 = pneg %p153
        %p394 = pneg %p177
        %p395 = pneg %p174
        %p396 = pneg %p207
        %p397 = pneg %p204
        %s398 = sand.u32 %s194, 1
        %s399 = scalar_lea.sflag [#allocation4], %s398
        %s400 = sand.u32 %s194, 1
        %s401 = smul.addr %s400, 32
        %s402 = scalar_lea.vmem [#allocation11], %s401
        %s403 = smul.u32 %s30, 2
        %s404 = ssub.s32 %s31, 1
        %p405 = scmp.gt.s32.totalorder %s404, 0
        %s406 = scalar_select %p405, %s404, 0
        %s407 = sadd.s32 %s403, %s406
        %s408 = smul.u32 %s30, 2
        %s409 = sadd.s32 %s408, %s31
        %s410 = smul.u32 %s30, 2
        %s411 = sadd.s32 %s31, 1
        %p412 = scmp.lt.s32.totalorder %s411, 1
        %s413 = scalar_select %p412, %s411, 1
        %s414 = sadd.s32 %s410, %s413
        %s415 = smul.u32 %s30, 2
        %s416 = sadd.s32 %s415, %s31
        %v417 = vld [vmem:[%s345] sm:$0xff]
        %v418 = vld [vmem:[%s345 + $0x8] sm:$0xff]
        %v419 = vld [vmem:[%s345 + $0x10] sm:$0xff]
        %v420 = vld [vmem:[%s345 + $0x18] sm:$0xff]
        %p421 = scmp.gt.s32.totalorder %s31, 0
        %s422 = scalar_select %p421, 1, 0
        %s423 = scvt.s32.f32 %s422
        %p424 = scmp.lt.s32.totalorder %s31, 1
        %s425 = scalar_select %p424, 1, 0
        %s426 = scvt.s32.f32 %s425
        %s427 = scalar_lea.vmem %s335, 7 [#allocation2]
        %v428 = vld [vmem:[%s427] ss:$8 sm:$0xf]
        %v429 = vstv %s423
        %v430 = vmul.f32 %v428, %v429
        %v431 = vld [vmem:[%s355] ss:$8 sm:$0xf]
        %v432 = vstv %s426
        %v433 = vmul.f32 %v431, %v432
        %v434 = vlaneseq
        %v435 = vshrl.u32 %v434, 7
        %vm436 = vcmp.eq.s32.totalorder %v435, 0
        %v437 = vrot.slane %v417, 7
        %v438 = vrot.slane %v418, 7
        %v439 = vrot.slane %v419, 7
        %v440 = vrot.slane %v420, 7
        %v442 = vperm.slane %v430, 0
        %v443 = vperm.slane %v430, 1
        %v444 = vperm.slane %v430, 2
        %v445 = vperm.slane %v430, 3
        %v450 = vsel %vm436, %v442, %v437
        %v451 = vsel %vm436, %v443, %v438
        %v452 = vsel %vm436, %v444, %v439
        %v453 = vsel %vm436, %v445, %v440
        %vm454 = vcmp.eq.s32.totalorder %v435, 7
        %v455 = vrot.slane %v417, 1
        %v456 = vrot.slane %v418, 1
        %v457 = vrot.slane %v419, 1
        %v458 = vrot.slane %v420, 1
        %v460 = vperm.slane %v433, 0
        %v461 = vperm.slane %v433, 1
        %v462 = vperm.slane %v433, 2
        %v463 = vperm.slane %v433, 3
        %v468 = vsel %vm454, %v460, %v455
        %v469 = vsel %vm454, %v461, %v456
        %v470 = vsel %vm454, %v462, %v457
        %v471 = vsel %vm454, %v463, %v458
        %v472 = vld [vmem:[#allocation8] sm:$0xff]
        %v473 = vld [vmem:[#allocation8 + $0x8] sm:$0xff]
        %v474 = vld [vmem:[#allocation8 + $0x10] sm:$0xff]
        %v475 = vld [vmem:[#allocation8 + $0x18] sm:$0xff]
        %v476 = vld [vmem:[#allocation8 + $0x20] sm:$0x1]
        %v477 = vld [vmem:[#allocation8 + $0x28] sm:$0x1]
        %v478 = vld [vmem:[#allocation8 + $0x30] sm:$0x1]
        %v479 = vld [vmem:[#allocation8 + $0x38] sm:$0x1]
        %v480 = vld [vmem:[#allocation10] sm:$0xf]
        %481 = vrot.lane.b32.xlu0 %v450, 32
        %v482 = vpop.permute.xlu0 %481
        %483 = vrot.lane.b32.xlu0 %v451, 32
        %v484 = vpop.permute.xlu0 %483
        %485 = vrot.lane.b32.xlu0 %v452, 32
        %v486 = vpop.permute.xlu0 %485
        %487 = vrot.lane.b32.xlu0 %v453, 32
        %v488 = vpop.permute.xlu0 %487
        %v489 = vlaneseq
        %v490 = vand.u32 %v489, 127
        %vm491 = vcmp.lt.s32.totalorder %v490, 32
        %v492 = vsel %vm491, %v486, %v488
        %v493 = vsel %vm491, %v484, %v486
        %v494 = vsel %vm491, %v482, %v484
        %v495 = vsel %vm491, %v488, %v482
        %496 = vrot.lane.b32.xlu0 %v450, 96
        %v497 = vpop.permute.xlu0 %496
        %498 = vrot.lane.b32.xlu0 %v451, 96
        %v499 = vpop.permute.xlu0 %498
        %500 = vrot.lane.b32.xlu0 %v452, 96
        %v501 = vpop.permute.xlu0 %500
        %502 = vrot.lane.b32.xlu0 %v453, 96
        %v503 = vpop.permute.xlu0 %502
        %vm504 = vcmp.lt.s32.totalorder %v490, 96
        %v505 = vsel %vm504, %v501, %v503
        %v506 = vsel %vm504, %v499, %v501
        %v507 = vsel %vm504, %v497, %v499
        %v508 = vsel %vm504, %v503, %v497
        %v509 = vperm.slane %v472, 0
        %v510 = vperm.slane %v473, 0
        %v511 = vperm.slane %v474, 0
        %v512 = vperm.slane %v475, 0
        %v513 = vmul.f32 %v495, %v509
        %v514 = vmul.f32 %v494, %v510
        %v515 = vmul.f32 %v493, %v511
        %v516 = vmul.f32 %v492, %v512
        %v518 = vperm.slane %v480, 0
        %v519 = vperm.slane %v480, 1
        %v520 = vperm.slane %v480, 2
        %v521 = vperm.slane %v480, 3
        %v526 = vadd.f32 %v518, %v513
        %v527 = vadd.f32 %v519, %v514
        %v528 = vadd.f32 %v520, %v515
        %v529 = vadd.f32 %v521, %v516
        %v530 = vperm.slane %v472, 1
        %v531 = vperm.slane %v473, 1
        %v532 = vperm.slane %v474, 1
        %v533 = vperm.slane %v475, 1
        %v534 = vmul.f32 %v450, %v530
        %v535 = vmul.f32 %v451, %v531
        %v536 = vmul.f32 %v452, %v532
        %v537 = vmul.f32 %v453, %v533
        %v538 = vadd.f32 %v526, %v534
        %v539 = vadd.f32 %v527, %v535
        %v540 = vadd.f32 %v528, %v536
        %v541 = vadd.f32 %v529, %v537
        %v542 = vperm.slane %v472, 2
        %v543 = vperm.slane %v473, 2
        %v544 = vperm.slane %v474, 2
        %v545 = vperm.slane %v475, 2
        %v546 = vmul.f32 %v507, %v542
        %v547 = vmul.f32 %v506, %v543
        %v548 = vmul.f32 %v505, %v544
        %v549 = vmul.f32 %v508, %v545
        %v550 = vadd.f32 %v538, %v546
        %v551 = vadd.f32 %v539, %v547
        %v552 = vadd.f32 %v540, %v548
        %v553 = vadd.f32 %v541, %v549
        %554 = vrot.lane.b32.xlu0 %v417, 32
        %v555 = vpop.permute.xlu0 %554
        %556 = vrot.lane.b32.xlu0 %v418, 32
        %v557 = vpop.permute.xlu0 %556
        %558 = vrot.lane.b32.xlu0 %v419, 32
        %v559 = vpop.permute.xlu0 %558
        %560 = vrot.lane.b32.xlu0 %v420, 32
        %v561 = vpop.permute.xlu0 %560
        %v562 = vsel %vm491, %v559, %v561
        %v563 = vsel %vm491, %v557, %v559
        %v564 = vsel %vm491, %v555, %v557
        %v565 = vsel %vm491, %v561, %v555
        %566 = vrot.lane.b32.xlu0 %v417, 96
        %v567 = vpop.permute.xlu0 %566
        %568 = vrot.lane.b32.xlu0 %v418, 96
        %v569 = vpop.permute.xlu0 %568
        %570 = vrot.lane.b32.xlu0 %v419, 96
        %v571 = vpop.permute.xlu0 %570
        %572 = vrot.lane.b32.xlu0 %v420, 96
        %v573 = vpop.permute.xlu0 %572
        %v574 = vsel %vm504, %v571, %v573
        %v575 = vsel %vm504, %v569, %v571
        %v576 = vsel %vm504, %v567, %v569
        %v577 = vsel %vm504, %v573, %v567
        %v578 = vperm.slane %v472, 3
        %v579 = vperm.slane %v473, 3
        %v580 = vperm.slane %v474, 3
        %v581 = vperm.slane %v475, 3
        %v582 = vmul.f32 %v565, %v578
        %v583 = vmul.f32 %v564, %v579
        %v584 = vmul.f32 %v563, %v580
        %v585 = vmul.f32 %v562, %v581
        %v586 = vadd.f32 %v550, %v582
        %v587 = vadd.f32 %v551, %v583
        %v588 = vadd.f32 %v552, %v584
        %v589 = vadd.f32 %v553, %v585
        %v590 = vperm.slane %v472, 4
        %v591 = vperm.slane %v473, 4
        %v592 = vperm.slane %v474, 4
        %v593 = vperm.slane %v475, 4
        %v594 = vmul.f32 %v417, %v590
        %v595 = vmul.f32 %v418, %v591
        %v596 = vmul.f32 %v419, %v592
        %v597 = vmul.f32 %v420, %v593
        %v598 = vadd.f32 %v586, %v594
        %v599 = vadd.f32 %v587, %v595
        %v600 = vadd.f32 %v588, %v596
        %v601 = vadd.f32 %v589, %v597
        %v602 = vperm.slane %v472, 5
        %v603 = vperm.slane %v473, 5
        %v604 = vperm.slane %v474, 5
        %v605 = vperm.slane %v475, 5
        %v606 = vmul.f32 %v576, %v602
        %v607 = vmul.f32 %v575, %v603
        %v608 = vmul.f32 %v574, %v604
        %v609 = vmul.f32 %v577, %v605
        %v610 = vadd.f32 %v598, %v606
        %v611 = vadd.f32 %v599, %v607
        %v612 = vadd.f32 %v600, %v608
        %v613 = vadd.f32 %v601, %v609
        %614 = vrot.lane.b32.xlu0 %v468, 32
        %v615 = vpop.permute.xlu0 %614
        %616 = vrot.lane.b32.xlu0 %v469, 32
        %v617 = vpop.permute.xlu0 %616
        %618 = vrot.lane.b32.xlu0 %v470, 32
        %v619 = vpop.permute.xlu0 %618
        %620 = vrot.lane.b32.xlu0 %v471, 32
        %v621 = vpop.permute.xlu0 %620
        %v622 = vsel %vm491, %v619, %v621
        %v623 = vsel %vm491, %v617, %v619
        %v624 = vsel %vm491, %v615, %v617
        %v625 = vsel %vm491, %v621, %v615
        %626 = vrot.lane.b32.xlu0 %v468, 96
        %v627 = vpop.permute.xlu0 %626
        %628 = vrot.lane.b32.xlu0 %v469, 96
        %v629 = vpop.permute.xlu0 %628
        %630 = vrot.lane.b32.xlu0 %v470, 96
        %v631 = vpop.permute.xlu0 %630
        %632 = vrot.lane.b32.xlu0 %v471, 96
        %v633 = vpop.permute.xlu0 %632
        %v634 = vsel %vm504, %v631, %v633
        %v635 = vsel %vm504, %v629, %v631
        %v636 = vsel %vm504, %v627, %v629
        %v637 = vsel %vm504, %v633, %v627
        %v638 = vperm.slane %v472, 6
        %v639 = vperm.slane %v473, 6
        %v640 = vperm.slane %v474, 6
        %v641 = vperm.slane %v475, 6
        %v642 = vmul.f32 %v625, %v638
        %v643 = vmul.f32 %v624, %v639
        %v644 = vmul.f32 %v623, %v640
        %v645 = vmul.f32 %v622, %v641
        %v646 = vadd.f32 %v610, %v642
        %v647 = vadd.f32 %v611, %v643
        %v648 = vadd.f32 %v612, %v644
        %v649 = vadd.f32 %v613, %v645
        %v650 = vperm.slane %v472, 7
        %v651 = vperm.slane %v473, 7
        %v652 = vperm.slane %v474, 7
        %v653 = vperm.slane %v475, 7
        %v654 = vmul.f32 %v468, %v650
        %v655 = vmul.f32 %v469, %v651
        %v656 = vmul.f32 %v470, %v652
        %v657 = vmul.f32 %v471, %v653
        %v658 = vadd.f32 %v646, %v654
        %v659 = vadd.f32 %v647, %v655
        %v660 = vadd.f32 %v648, %v656
        %v661 = vadd.f32 %v649, %v657
        %v662 = vperm.slane %v476, 0
        %v663 = vperm.slane %v477, 0
        %v664 = vperm.slane %v478, 0
        %v665 = vperm.slane %v479, 0
        %v666 = vmul.f32 %v636, %v662
        %v667 = vmul.f32 %v635, %v663
        %v668 = vmul.f32 %v634, %v664
        %v669 = vmul.f32 %v637, %v665
        %v670 = vadd.f32 %v658, %v666
        %v671 = vadd.f32 %v659, %v667
        %v672 = vadd.f32 %v660, %v668
        %v673 = vadd.f32 %v661, %v669
        %674 = vst [vmem:[%s402] sm:$0xff] %v670
        %675 = vst [vmem:[%s402 + $0x8] sm:$0xff] %v671
        %676 = vst [vmem:[%s402 + $0x10] sm:$0xff] %v672
        %677 = vst [vmem:[%s402 + $0x18] sm:$0xff] %v673
        %s678 = sand.u32 %s194, 1
        %s679 = scalar_lea.sflag [#allocation4], %s678
        %s680 = sand.u32 %s194, 1
        %s681 = smul.addr %s680, 32
        %s682 = scalar_lea.vmem [#allocation11], %s681
        // Predicated region
        $region61: #{tpu_custom_call.1} parent=39 // pred_check
          %p683 = pneg %p204
        $region62: #{tpu_custom_call.1} parent=39 // pred_check_branch
          %685 = sbr.rel (%p683) target = $region64
        $region63: #{tpu_custom_call.1} parent=39 // pred_region
          %s686 = smul.u32 %s30, 2
          %s687 = sadd.s32 %s686, %s31
          %689 = vsyncadd %s679, 0
          %s690 = smul.addr %s687, 4
          %s691 = smul.addr %s690, 8
          %s692 = scalar_lea.hbm %s5, %s691
          %s694 = sshll.u32 %s682, 4
          %s695 = int_to_ptr.vmem [resolvable:$true] %s694
          %s696 = sshll.u32 %s692, 4
          %s697 = int_to_ptr.hbm [resolvable:$true] %s696
          %699 = dma.vmem_to_hbm [thread:$0]  %s695, 512, %s697, %s679
        $region64: #{tpu_custom_call.1} parent=39 // pred_fallthru
          _
      $region40: #{tpu_custom_call.1} parent=5 // pred_fallthru
        _
      %p700 = scmp.le.s32.totalorder 2, %s21
      // Predicated region
      $region65: #{tpu_custom_call.1} parent=5 // pred_check
        %p701 = pneg %p700
      $region66: #{tpu_custom_call.1} parent=5 // pred_check_branch
        %703 = sbr.rel (%p701) target = $region68
      $region67: #{tpu_custom_call.1} parent=5 // pred_region
        %s704 = ssub.s32 %s21, 2
        // Predicated region
        $region69: #{tpu_custom_call.1} parent=67 // pred_check
          %p705 = pneg %p210
        $region70: #{tpu_custom_call.1} parent=67 // pred_check_branch
          %707 = sbr.rel (%p705) target = $region72
        $region71: #{tpu_custom_call.1} parent=67 // pred_region
          %s708 = sand.u32 %s195, 1
          %s709 = scalar_lea.sflag [#allocation4], %s708
          %s710 = sand.u32 %s195, 1
          %s711 = smul.addr %s710, 32
          %s712 = scalar_lea.vmem [#allocation11], %s711
          %714 = dma.done %s709, 512
        $region72: #{tpu_custom_call.1} parent=67 // pred_fallthru
          _
      $region68: #{tpu_custom_call.1} parent=5 // pred_fallthru
        _
    $region6: #{tpu_custom_call.1} parent=1 // loop_footer
      %s25 = sadd.s32 1, %s21
    $region7: #{tpu_custom_call.1} parent=1 // loop_footer_branch
      %20 = sbr.rel target = $region3
    $region8: #{tpu_custom_call.1} parent=1 // loop_exit
      _
    %715 = vsyncpa [#allocation3], 1
    %s716 = scalar_lea.sflag [#allocation3], 1
    %717 = vsyncpa %s716, 1
    %718 = vsyncpa [#allocation6], 1
    %s719 = scalar_lea.sflag [#allocation6], 1
    %720 = vsyncpa %s719, 1
    %721 = vsyncpa [#allocation9], 1
    %722 = vsyncpa [#allocation4], 1
    %s723 = scalar_lea.sflag [#allocation4], 1
    %724 = vsyncpa %s723, 1

</llo_original>
